<compile_context>
chip_gen: v6e
topology: v6e:2x2x1
jax: 0.10.0
libtpu: 0.0.40
codegen_flags: <defaults>
</compile_context>

<pallas_src>
import math
import numpy as np
import jax
import jax.numpy as jnp
from jax import lax
from jax.experimental import pallas as pl
from jax.experimental.pallas import tpu as pltpu

SQRT_4PI = math.sqrt(4.0 * math.pi)
SIGMA = 0.5            # width of the Gaussian radial basis (deterministic RadialModel)
N_BASIS = 16           # radial basis size of the deterministic RadialModel
R_MAX = 3.0
LMAX_FILTER = 1        # passed to the module as get_l_filters (restrict filters to l <= 1)


# ----------------------------- SO3 tables (host) -----------------------------
def clebsch_gordan(l_out, l_in, l_f):
    """Real-basis Clebsch-Gordan tensors for l in {0, 1} (self-consistent convention)."""
    key = (l_out, l_in, l_f)
    if key == (0, 0, 0):
        return np.ones((1, 1, 1), np.float32)
    if key == (0, 1, 1):
        return (np.eye(3, dtype=np.float32) / math.sqrt(3.0)).reshape(1, 3, 3)
    if key == (1, 0, 1):
        return (np.eye(3, dtype=np.float32) / math.sqrt(3.0)).reshape(3, 1, 3)
    if key == (1, 1, 0):
        return (np.eye(3, dtype=np.float32) / math.sqrt(3.0)).reshape(3, 3, 1)
    if key == (1, 1, 1):
        eps = np.zeros((3, 3, 3), np.float32)
        for i, j, k in [(0, 1, 2), (1, 2, 0), (2, 0, 1)]:
            eps[i, j, k] = 1.0
            eps[j, i, k] = -1.0
        return eps / math.sqrt(6.0)
    # TODO(synk): general (l_out, l_in, l_f) Clebsch-Gordan tables are not implemented.
    raise NotImplementedError(key)


def get_l_filters(l_in, p_in, l_out, p_out):
    ls = [l for l in range(abs(l_in - l_out), l_in + l_out + 1) if l <= LMAX_FILTER]
    return [l for l in ls if p_out == 0 or p_in * (-1) ** l == p_out]


def build_tables(Rs_in, Rs_out, normalization="norm"):
    n_in = sum(mul * (2 * l + 1) for mul, l, _ in Rs_in)
    n_out = sum(mul * (2 * l + 1) for mul, l, _ in Rs_out)
    out_pad = ((n_out * n_in + 127) // 128) * 128      # lane-dense output width

    # check_input_output (mirrors the torch module)
    for _, l_out, p_out in Rs_out:
        if not any(get_l_filters(l_in, p_in, l_out, p_out) for _, l_in, p_in in Rs_in):
            raise ValueError(f"output (l={l_out}, p={p_out}) cannot be generated")
    for _, l_in, p_in in Rs_in:
        if not any(get_l_filters(l_in, p_in, l_out, p_out) for _, l_out, p_out in Rs_out):
            raise ValueError(f"input (l={l_in}, p={p_in}) cannot be used")

    set_of_l = set()
    for _, l_out, p_out in Rs_out:
        for _, l_in, p_in in Rs_in:
            set_of_l |= set(get_l_filters(l_in, p_in, l_out, p_out))
    set_of_l = sorted(set_of_l)
    n_ylm = sum(2 * l + 1 for l in set_of_l)

    def lm_norm(l_out, l_in):
        if normalization == "norm":
            return math.sqrt(2 * l_in + 1) * SQRT_4PI
        return math.sqrt(2 * l_out + 1) * SQRT_4PI

    norm_coef = np.zeros((len(Rs_out), len(Rs_in), 2), np.float64)
    for i, (mul_out, l_out, p_out) in enumerate(Rs_out):
        num_summed = sum(mul_in * len(get_l_filters(l_in, p_in, l_out, p_out))
                         for mul_in, l_in, p_in in Rs_in)
        for j, (mul_in, l_in, p_in) in enumerate(Rs_in):
            norm_coef[i, j, 0] = lm_norm(l_out, l_in) / math.sqrt(num_summed)
            norm_coef[i, j, 1] = lm_norm(l_out, l_in) / math.sqrt(mul_in)

    entries = []   # one entry per q = (block_out i, block_in j, u, v, filter k, m_f)
    n_path = 0
    begin_out = 0
    for i, (mul_out, l_out, p_out) in enumerate(Rs_out):
        begin_in = 0
        for j, (mul_in, l_in, p_in) in enumerate(Rs_in):
            l_filters = get_l_filters(l_in, p_in, l_out, p_out)
            if l_filters:
                nf = len(l_filters)
                for u in range(mul_out):
                    for v in range(mul_in):
                        for k, lf in enumerate(l_filters):
                            path = n_path + (u * mul_in + v) * nf + k
                            y_off = sum(2 * l + 1 for l in set_of_l if l < lf)
                            C = clebsch_gordan(l_out, l_in, lf)
                            for mf in range(2 * lf + 1):
                                entries.append((path, y_off + mf, i, j,
                                                begin_out + u * (2 * l_out + 1),
                                                begin_in + v * (2 * l_in + 1),
                                                C[:, :, mf]))
                n_path += mul_out * mul_in * nf
            begin_in += mul_in * (2 * l_in + 1)
        begin_out += mul_out * (2 * l_out + 1)

    Q = len(entries)
    P_path = np.zeros((n_path, Q), np.float32)   # one-hot scatter path -> q
    P_ylm = np.zeros((n_ylm, Q), np.float32)     # one-hot scatter ylm  -> q
    norm0 = np.zeros((Q,), np.float32)
    norm1 = np.zeros((Q,), np.float32)
    B = np.zeros((Q, out_pad), np.float32)       # CG values, lane-padded to out_pad
    for q, (path, ylm, i, j, a0, b0, Cm) in enumerate(entries):
        P_path[path, q] = 1.0
        P_ylm[ylm, q] = 1.0
        norm0[q] = norm_coef[i, j, 0]
        norm1[q] = norm_coef[i, j, 1]
        for mo in range(Cm.shape[0]):
            for mi in range(Cm.shape[1]):
                B[q, (a0 + mo) * n_in + (b0 + mi)] = Cm[mo, mi]

    B_norm = B * norm0[:, None]                          # fold generic norm into the basis
    ratio = (norm1 / norm0).reshape(1, Q).astype(np.float32)   # radii==0 correction factor

    return {
        "P_path": jnp.asarray(P_path), "P_ylm": jnp.asarray(P_ylm),
        "B_norm": jnp.asarray(B_norm), "ratio": jnp.asarray(ratio),
        "norm_coef": norm_coef, "set_of_l_filters": set_of_l,
        "n_in": n_in, "n_out": n_out, "out_pad": out_pad,
        "n_path": n_path, "Q": Q, "n_ylm": n_ylm,
    }


# ------------------------------- Pallas kernel --------------------------------
def _se3_kernel_body(r_ref, wq_ref, pylm_ref, ratio_ref, basis_ref, out_ref):
    r = r_ref[...]                                              # (TB, 3)
    r2 = jnp.sum(r * r, axis=1, keepdims=True)                  # (TB, 1)
    is_zero = r2 == 0.0
    inv = lax.rsqrt(jnp.where(is_zero, 1.0, r2))                # EUP rsqrt, no divide
    radii = r2 * inv                                            # |r|
    unit = jnp.where(is_zero, 0.0, r * inv)                     # r / |r| (0 at r == 0)

    # RadialModel: Gaussian radial basis (centers generated in-kernel) + linear layer.
    centers = lax.broadcasted_iota(jnp.int32, (1, N_BASIS), 1).astype(jnp.float32)
    centers = centers * jnp.float32(R_MAX / (N_BASIS - 1))
    diff = (radii - centers) * jnp.float32(1.0 / SIGMA)         # (TB, N_BASIS)
    rb = jnp.exp(-0.5 * diff * diff)

    # Radial coefficients already scattered onto the q=(path, m_f) axis:
    # wq = W_radial @ P_path was fused on the host (exact, P_path is one-hot).
    coeff_q = jnp.dot(rb, wq_ref[...], preferred_element_type=jnp.float32)   # (TB, Q)

    # Real spherical harmonics for set_of_l_filters == [0, 1]:
    # Y_0 = 1/sqrt(4*pi); Y_1 = sqrt(3/(4*pi)) * (x, y, z)/|r|, defined as 0 at r == 0.
    # TODO(synk): general l > 1 spherical harmonics are not implemented in-kernel.
    y0 = jnp.full((r.shape[0], 1), 1.0 / SQRT_4PI, dtype=jnp.float32)
    y1 = jnp.float32(math.sqrt(3.0 / (4.0 * math.pi))) * unit
    ys = jnp.concatenate([y0, y1], axis=1)                      # (TB, n_ylm)
    y_q = jnp.dot(ys, pylm_ref[...], preferred_element_type=jnp.float32)     # (TB, Q)

    w = coeff_q * y_q
    # norm0 is folded into the CG basis; at radii == 0 apply the norm1/norm0 correction.
    w = w * jnp.where(is_zero, ratio_ref[...], 1.0)

    # Contract against the (norm-scaled, lane-padded) Clebsch-Gordan basis.
    out_ref[...] = jnp.dot(w, basis_ref[...], preferred_element_type=jnp.float32)


def se3_point_kernel(r, W_radial, tables, tile_b=1024):
    P_ylm, ratio, Bmat = tables["P_ylm"], tables["ratio"], tables["B_norm"]
    n_out, n_in, out_pad = tables["n_out"], tables["n_in"], tables["out_pad"]

    # Host-side exact fusion: scatter the radial linear layer onto the q axis once.
    Wq = jnp.dot(W_radial.astype(jnp.float32), tables["P_path"])   # (N_BASIS, Q)

    size = r.shape[:-1]
    r_flat = r.reshape(-1, 3).astype(jnp.float32)
    batch = r_flat.shape[0]

    # Tile selection (sweepable): large point-major tiles, multiple of 8 sublanes,
    # capped so the grid has >= 2 steps when possible (v7x has 2 TensorCores and only
    # engages both with >= 2 parallel grid steps). At tile_b=1024 the double-buffered
    # output tile is ~1 MiB -> comfortably inside the default scoped VMEM on all gens.
    half = pl.cdiv(batch, 2)
    tb = max(8, min(tile_b, pl.cdiv(half, 8) * 8))
    n_tiles = pl.cdiv(batch, tb)
    padded = n_tiles * tb
    if padded != batch:
        # Padded rows are all-zero -> hit the radii==0 branch; sliced away below.
        r_flat = jnp.pad(r_flat, ((0, padded - batch), (0, 0)))

    def full(arr):
        return pl.BlockSpec(arr.shape, lambda i: (0, 0))

    out = pl.pallas_call(
        _se3_kernel_body,
        out_shape=jax.ShapeDtypeStruct((padded, out_pad), jnp.float32),
        grid_spec=pltpu.PrefetchScalarGridSpec(
            num_scalar_prefetch=0,
            grid=(n_tiles,),
            in_specs=[
                pl.BlockSpec((tb, 3), lambda i: (i, 0)),
                full(Wq), full(P_ylm), full(ratio), full(Bmat),
            ],
            out_specs=pl.BlockSpec((tb, out_pad), lambda i: (i, 0)),
        ),
        compiler_params=pltpu.CompilerParams(dimension_semantics=("parallel",)),
    )(r_flat, Wq, P_ylm, ratio, Bmat)

    out = out[:batch, : n_out * n_in]
    return out.reshape(*size, n_out, n_in)


# ----------------------- pure numpy reference (torch loop) --------------------
def reference_forward(r, W_radial, centers, Rs_in, Rs_out, tables):
    set_of_l = tables["set_of_l_filters"]
    norm_coef = tables["norm_coef"]
    n_out, n_in = tables["n_out"], tables["n_in"]
    size = r.shape[:-1]
    rf = r.reshape(-1, 3).astype(np.float64)
    batch = rf.shape[0]
    radii = np.linalg.norm(rf, axis=1)
    rb = np.exp(-0.5 * ((radii[:, None] - centers.reshape(-1)[None, :]) / SIGMA) ** 2)
    coeff = rb @ W_radial.astype(np.float64)
    safe = np.where(radii == 0.0, 1.0, radii)
    unit = np.where(radii[:, None] == 0.0, 0.0, rf / safe[:, None])
    Ys = np.concatenate([np.full((batch, 1), 1.0 / SQRT_4PI),
                         math.sqrt(3.0 / (4.0 * math.pi)) * unit], axis=1).T   # [m, z]

    kernel = np.zeros((batch, n_out, n_in))
    begin_c = 0
    begin_out = 0
    for i, (mul_out, l_out, p_out) in enumerate(Rs_out):
        s_out = slice(begin_out, begin_out + mul_out * (2 * l_out + 1))
        begin_out += mul_out * (2 * l_out + 1)
        begin_in = 0
        for j, (mul_in, l_in, p_in) in enumerate(Rs_in):
            s_in = slice(begin_in, begin_in + mul_in * (2 * l_in + 1))
            begin_in += mul_in * (2 * l_in + 1)
            l_filters = get_l_filters(l_in, p_in, l_out, p_out)
            if not l_filters:
                continue
            n = mul_out * mul_in * len(l_filters)
            c = coeff[:, begin_c:begin_c + n].reshape(batch, mul_out, mul_in, len(l_filters))
            begin_c += n
            K = 0
            for k, l_f in enumerate(l_filters):
                tmp = sum(2 * l + 1 for l in set_of_l if l < l_f)
                Y = Ys[tmp:tmp + 2 * l_f + 1]
                C = clebsch_gordan(l_out, l_in, l_f).astype(np.float64)
                K = K + np.einsum('ijk,kz,zuv->zuivj', C, Y, c[..., k])
            norm = np.where(radii == 0.0, norm_coef[i, j, 1], norm_coef[i, j, 0])
            K = K * norm.reshape(batch, 1, 1, 1, 1)
            kernel[:, s_out, s_in] = K.reshape(batch, mul_out * (2 * l_out + 1),
                                               mul_in * (2 * l_in + 1))
    return kernel.reshape(*size, n_out, n_in)


# ----------------------------------- main --------------------------------------
if __name__ == "__main__":
    Rs_in = [(4, 0, 0), (2, 1, 0)]     # 4x scalar + 2x vector  -> n_in  = 10
    Rs_out = [(4, 0, 0), (2, 1, 0)]    # 4x scalar + 2x vector  -> n_out = 10
    tables = build_tables(Rs_in, Rs_out, normalization="norm")

    key = jax.random.PRNGKey(0)
    k_r, k_w = jax.random.split(key)
    r = jax.random.normal(k_r, (4, 8, 3), dtype=jnp.float32)   # [*size, 3], 32 points total
    r = r.at[0, 0].set(0.0)                                    # exercise the radii == 0 branch
    W_radial = (jax.random.normal(k_w, (N_BASIS, tables["n_path"]), dtype=jnp.float32)
                / math.sqrt(N_BASIS))
    centers_np = np.linspace(0.0, R_MAX, N_BASIS)              # matches in-kernel iota centers

    out = se3_point_kernel(r, W_radial, tables)
    out = jax.block_until_ready(out)

    ref = reference_forward(np.asarray(r), np.asarray(W_radial), centers_np,
                            Rs_in, Rs_out, tables)
    assert out.shape == (4, 8, tables["n_out"], tables["n_in"])
    np.testing.assert_allclose(np.asarray(out), ref, rtol=1e-4, atol=1e-4)
    print("KERNEL_OK")
</pallas_src>

<mosaic_0001>
module attributes {stable_mosaic.version = 11 : i64} {
  func.func @_se3_kernel_body(%arg0: i32, %arg1: memref<16x3xf32, #tpu.memory_space<vmem>>, %arg2: memref<16x80xf32, #tpu.memory_space<vmem>>, %arg3: memref<4x80xf32, #tpu.memory_space<vmem>>, %arg4: memref<1x80xf32, #tpu.memory_space<vmem>>, %arg5: memref<80x128xf32, #tpu.memory_space<vmem>>, %arg6: memref<16x128xf32, #tpu.memory_space<vmem>>) attributes {dimension_semantics = [#tpu.dimension_semantics<parallel>], iteration_bounds = array<i64: 2>, scalar_prefetch = 0 : i64, scratch_operands = 0 : i64, tpu.core_type = #tpu.core_type<tc>, window_params = [{transform_indices = @transform_0, window_bounds = array<i64: 16, 3>}, {pipeline_mode = #tpu.pipeline_mode<synchronous>, transform_indices = @transform_1, window_bounds = array<i64: 16, 80>}, {pipeline_mode = #tpu.pipeline_mode<synchronous>, transform_indices = @transform_2, window_bounds = array<i64: 4, 80>}, {pipeline_mode = #tpu.pipeline_mode<synchronous>, transform_indices = @transform_3, window_bounds = array<i64: 1, 80>}, {pipeline_mode = #tpu.pipeline_mode<synchronous>, transform_indices = @transform_4, window_bounds = array<i64: 80, 128>}, {transform_indices = @transform_5, window_bounds = array<i64: 16, 128>}]} {
    %c0 = arith.constant 0 : index
    %c0_0 = arith.constant 0 : index
    %0 = vector.load %arg1[%c0, %c0_0] : memref<16x3xf32, #tpu.memory_space<vmem>>, vector<16x3xf32>
    %1 = arith.mulf %0, %0 : vector<16x3xf32>
    %cst = arith.constant dense<0.000000e+00> : vector<16xf32>
    %2 = vector.multi_reduction <add>, %1, %cst [1] : vector<16x3xf32> to vector<16xf32>
    %3 = vector.shape_cast %2 : vector<16xf32> to vector<16x1xf32>
    %cst_1 = arith.constant 0.000000e+00 : f32
    %4 = vector.broadcast %cst_1 : f32 to vector<16x1xf32>
    %5 = arith.cmpf oeq, %3, %4 : vector<16x1xf32>
    %cst_2 = arith.constant 1.000000e+00 : f32
    %6 = vector.broadcast %cst_2 : f32 to vector<16x1xf32>
    %7 = arith.select %5, %6, %3 : vector<16x1xi1>, vector<16x1xf32>
    %8 = math.rsqrt %7 : vector<16x1xf32>
    %9 = arith.mulf %3, %8 : vector<16x1xf32>
    %10 = vector.broadcast %8 : vector<16x1xf32> to vector<16x3xf32>
    %11 = arith.mulf %0, %10 : vector<16x3xf32>
    %cst_3 = arith.constant 0.000000e+00 : f32
    %12 = vector.shape_cast %5 : vector<16x1xi1> to vector<16x1xi1>
    %13 = vector.broadcast %12 : vector<16x1xi1> to vector<16x3xi1>
    %14 = vector.broadcast %cst_3 : f32 to vector<16x3xf32>
    %15 = arith.select %13, %14, %11 : vector<16x3xi1>, vector<16x3xf32>
    %16 = tpu.iota {dimensions = array<i32: 1>} : vector<1x16xi32>
    %17 = arith.sitofp %16 : vector<1x16xi32> to vector<1x16xf32>
    %cst_4 = arith.constant 2.000000e-01 : f32
    %18 = vector.broadcast %cst_4 : f32 to vector<1x16xf32>
    %19 = arith.mulf %17, %18 : vector<1x16xf32>
    %20 = vector.broadcast %9 : vector<16x1xf32> to vector<16x16xf32>
    %21 = vector.broadcast %19 : vector<1x16xf32> to vector<16x16xf32>
    %22 = arith.subf %20, %21 : vector<16x16xf32>
    %cst_5 = arith.constant 2.000000e+00 : f32
    %23 = vector.broadcast %cst_5 : f32 to vector<16x16xf32>
    %24 = arith.mulf %22, %23 : vector<16x16xf32>
    %cst_6 = arith.constant -5.000000e-01 : f32
    %25 = vector.broadcast %cst_6 : f32 to vector<16x16xf32>
    %26 = arith.mulf %25, %24 : vector<16x16xf32>
    %27 = arith.mulf %26, %24 : vector<16x16xf32>
    %28 = math.exp %27 : vector<16x16xf32>
    %c0_7 = arith.constant 0 : index
    %c0_8 = arith.constant 0 : index
    %29 = vector.load %arg2[%c0_7, %c0_8] : memref<16x80xf32, #tpu.memory_space<vmem>>, vector<16x80xf32>
    %cst_9 = arith.constant dense<0.000000e+00> : vector<16x80xf32>
    %30 = tpu.matmul %28, %29, %cst_9 {dimension_numbers = #tpu.dot_dimension_numbers<[1], [0], [0], [1], [0, 0, 1, 1], [], []>} : vector<16x16xf32>, vector<16x80xf32>, vector<16x80xf32> -> vector<16x80xf32>
    %cst_10 = arith.constant 0.282094806 : f32
    %31 = vector.broadcast %cst_10 : f32 to vector<16x1xf32>
    %cst_11 = arith.constant 0.488602519 : f32
    %32 = vector.broadcast %cst_11 : f32 to vector<16x3xf32>
    %33 = arith.mulf %32, %15 : vector<16x3xf32>
    %34 = tpu.concatenate %31, %33 in 1 : vector<16x1xf32>, vector<16x3xf32> -> vector<16x4xf32>
    %c0_12 = arith.constant 0 : index
    %c0_13 = arith.constant 0 : index
    %35 = vector.load %arg3[%c0_12, %c0_13] : memref<4x80xf32, #tpu.memory_space<vmem>>, vector<4x80xf32>
    %cst_14 = arith.constant dense<0.000000e+00> : vector<16x80xf32>
    %36 = tpu.matmul %34, %35, %cst_14 {dimension_numbers = #tpu.dot_dimension_numbers<[1], [0], [0], [1], [0, 0, 1, 1], [], []>} : vector<16x4xf32>, vector<4x80xf32>, vector<16x80xf32> -> vector<16x80xf32>
    %37 = arith.mulf %30, %36 : vector<16x80xf32>
    %c0_15 = arith.constant 0 : index
    %c0_16 = arith.constant 0 : index
    %38 = vector.load %arg4[%c0_15, %c0_16] : memref<1x80xf32, #tpu.memory_space<vmem>>, vector<1x80xf32>
    %cst_17 = arith.constant 1.000000e+00 : f32
    %39 = vector.shape_cast %5 : vector<16x1xi1> to vector<16x1xi1>
    %40 = vector.broadcast %39 : vector<16x1xi1> to vector<16x80xi1>
    %41 = vector.shape_cast %38 : vector<1x80xf32> to vector<1x80xf32>
    %42 = vector.broadcast %41 : vector<1x80xf32> to vector<16x80xf32>
    %43 = vector.broadcast %cst_17 : f32 to vector<16x80xf32>
    %44 = arith.select %40, %42, %43 : vector<16x80xi1>, vector<16x80xf32>
    %45 = arith.mulf %37, %44 : vector<16x80xf32>
    %c0_18 = arith.constant 0 : index
    %c0_19 = arith.constant 0 : index
    %46 = vector.load %arg5[%c0_18, %c0_19] : memref<80x128xf32, #tpu.memory_space<vmem>>, vector<80x128xf32>
    %cst_20 = arith.constant dense<0.000000e+00> : vector<16x128xf32>
    %47 = tpu.matmul %45, %46, %cst_20 {dimension_numbers = #tpu.dot_dimension_numbers<[1], [0], [0], [1], [0, 0, 1, 1], [], []>} : vector<16x80xf32>, vector<80x128xf32>, vector<16x128xf32> -> vector<16x128xf32>
    %c0_21 = arith.constant 0 : index
    %c0_22 = arith.constant 0 : index
    %48 = vector.load %arg6[%c0_21, %c0_22] : memref<16x128xf32, #tpu.memory_space<vmem>>, vector<16x128xf32>
    tpu.vector_store %arg6[%c0_21, %c0_22], %47 {strides = array<i32>} : memref<16x128xf32, #tpu.memory_space<vmem>>, vector<16x128xf32>,
    return
  }
  func.func @transform_0(%arg0: i32) -> (i32, i32) {
    %c0_i32 = arith.constant 0 : i32
    %c0_i32_0 = arith.constant 0 : i32
    return %arg0, %c0_i32 : i32, i32
  }
  func.func @transform_1(%arg0: i32) -> (i32, i32) {
    %c0_i32 = arith.constant 0 : i32
    %c0_i32_0 = arith.constant 0 : i32
    %c0_i32_1 = arith.constant 0 : i32
    return %c0_i32, %c0_i32_0 : i32, i32
  }
  func.func @transform_2(%arg0: i32) -> (i32, i32) {
    %c0_i32 = arith.constant 0 : i32
    %c0_i32_0 = arith.constant 0 : i32
    %c0_i32_1 = arith.constant 0 : i32
    return %c0_i32, %c0_i32_0 : i32, i32
  }
  func.func @transform_3(%arg0: i32) -> (i32, i32) {
    %c0_i32 = arith.constant 0 : i32
    %c0_i32_0 = arith.constant 0 : i32
    %c0_i32_1 = arith.constant 0 : i32
    return %c0_i32, %c0_i32_0 : i32, i32
  }
  func.func @transform_4(%arg0: i32) -> (i32, i32) {
    %c0_i32 = arith.constant 0 : i32
    %c0_i32_0 = arith.constant 0 : i32
    %c0_i32_1 = arith.constant 0 : i32
    return %c0_i32, %c0_i32_0 : i32, i32
  }
  func.func @transform_5(%arg0: i32) -> (i32, i32) {
    %c0_i32 = arith.constant 0 : i32
    %c0_i32_0 = arith.constant 0 : i32
    return %arg0, %c0_i32 : i32, i32
  }
}

</mosaic_0001>

<llo_original>
// kernel: tpu_custom_call.1
$region0: #{tpu_custom_call.1}
  #allocation0 [shape = 'u32[]', space=smem, size = 0x4, offset = 0x4, fixed_abs, tag = 'smem constant byte address 0x4 - core index']
  #allocation1 [shape = 'u32[144,128]{1,0:T(1,128)}', space=vmem, size = 0x12000, scoped, tag = 'internal scratch']
  %s0 = inlined_call_operand.vmem [shape: f32[32,3], index: 0, kind: input, shape index: {}]
  %s1 = inlined_call_operand.vmem [shape: f32[16,80], index: 1, kind: input, shape index: {}]
  %s2 = inlined_call_operand.vmem [shape: f32[4,80], index: 2, kind: input, shape index: {}]
  %s3 = inlined_call_operand.vmem [shape: f32[1,80], index: 3, kind: input, shape index: {}]
  %s4 = inlined_call_operand.hbm [shape: f32[80,128], index: 4, kind: input, shape index: {}]
  %s5 = inlined_call_operand.hbm [shape: f32[32,128], index: 5, kind: output, shape index: {}]
  %s6 = sld [smem:[#allocation0]]
  $region57: #{tpu_custom_call.1} parent=0
    _
  %s8 = ssub.s32 1, %s6
  %s9 = scalar_select 0, %s8, %s6
  $region1: #{tpu_custom_call.1} parent=0
    #allocation2 [shape = 'u8[40960]{0}', space=vmem, size = 0xa000, scoped, tag = 'input window, operand 4, single buffered']
    #allocation3 [shape = 's32[2]{0}', space=sflag, size = 0x8, scoped, tag = 'scoped memory for tpu_custom_call.1']
    #allocation4 [shape = 's32[2]{0}', space=sflag, size = 0x8, scoped, tag = 'scoped memory for tpu_custom_call.1']
    #allocation5 [shape = 'u8[16384]{0}', space=vmem, size = 0x4000, scoped, tag = 'output window, operand 0']
    %10 = vsyncpa [#allocation3], 0
    %11 = vsyncpa [#allocation4], 0
    %s12 = scalar_lea.sflag [#allocation4], 1
    %13 = vsyncpa %s12, 0
    loop: start=0, step=1, limit=4
    $region2: #{tpu_custom_call.1} parent=1 // loop_pre_header
      _
    $region3: #{tpu_custom_call.1} parent=1 // loop_header
      %s15 = sphi 0, %s19
      %p16 = scmp.ge.s32.totalorder %s15, 4
      %s25 = sphi 0, %s27
      %s28 = sphi 0, %s25
      %s29 = sphi 0, %s28
      %s45 = sphi 0, %s29
      %s49 = sphi 0, %s49
      %s51 = sphi 0, %s49
      %s52 = sphi 0, %s51
      %s66 = sphi 0, %s52
      %s70 = sphi 0, %s70
      %s72 = sphi 0, %s70
      %s73 = sphi 0, %s72
      %s87 = sphi 0, %s73
      %s91 = sphi 0, %s91
      %s93 = sphi 0, %s91
      %s94 = sphi 0, %s93
      %s108 = sphi 0, %s94
      %s112 = sphi 0, %s112
      %s114 = sphi 0, %s112
      %s115 = sphi 0, %s114
      %s129 = sphi 0, %s115
      %s135 = sphi 0, %s137
      %s138 = sphi 0, %s135
      %s139 = sphi 0, %s138
      %s155 = sphi 0, %s139
    $region4: #{tpu_custom_call.1} parent=1 // loop_header_branch
      %18 = sbr.rel (%p16) target = $region8
    $region5: #{tpu_custom_call.1} parent=1 // loop_body
      %s20 = ssub.s32 %s15, 1
      %s21 = ssub.s32 %s15, 2
      %s22 = sadd.s32 %s15, 1
      %s23 = ssub.s32 %s15, %s22
      %p24 = scmp.eq.s32.totalorder %s23, 0
      %s26 = sadd.s32 %s25, 1
      %s27 = scalar_select %p24, %s25, %s26
      %p30 = pneg %p24
      %p31 = scmp.eq.s32.totalorder %s15, 1
      %p32 = por %p30, %p31
      %p33 = scmp.ne.s32.totalorder %s25, %s28
      %p34 = scmp.eq.s32.totalorder %s15, 0
      %p35 = por %p33, %p34
      %p36 = scmp.ne.s32.totalorder %s25, %s28
      %p37 = scmp.eq.s32.totalorder %s20, 1
      %p38 = por %p36, %p37
      %p39 = scmp.ne.s32.totalorder %s28, %s29
      %p40 = scmp.eq.s32.totalorder %s20, 0
      %p41 = por %p39, %p40
      %p42 = scmp.ne.s32.totalorder %s28, %s29
      %p43 = scmp.eq.s32.totalorder %s21, 1
      %p44 = por %p42, %p43
      %p46 = scmp.ne.s32.totalorder %s29, %s45
      %p47 = scmp.eq.s32.totalorder %s21, 0
      %p48 = por %p46, %p47
      %s50 = sadd.s32 %s49, 1
      %p53 = scmp.eq.s32.totalorder %s15, 1
      %p54 = scmp.ne.s32.totalorder %s49, %s51
      %p55 = scmp.eq.s32.totalorder %s15, 0
      %p56 = por %p54, %p55
      %p57 = scmp.ne.s32.totalorder %s49, %s51
      %p58 = scmp.eq.s32.totalorder %s20, 1
      %p59 = por %p57, %p58
      %p60 = scmp.ne.s32.totalorder %s51, %s52
      %p61 = scmp.eq.s32.totalorder %s20, 0
      %p62 = por %p60, %p61
      %p63 = scmp.ne.s32.totalorder %s51, %s52
      %p64 = scmp.eq.s32.totalorder %s21, 1
      %p65 = por %p63, %p64
      %p67 = scmp.ne.s32.totalorder %s52, %s66
      %p68 = scmp.eq.s32.totalorder %s21, 0
      %p69 = por %p67, %p68
      %s71 = sadd.s32 %s70, 1
      %p74 = scmp.eq.s32.totalorder %s15, 1
      %p75 = scmp.ne.s32.totalorder %s70, %s72
      %p76 = scmp.eq.s32.totalorder %s15, 0
      %p77 = por %p75, %p76
      %p78 = scmp.ne.s32.totalorder %s70, %s72
      %p79 = scmp.eq.s32.totalorder %s20, 1
      %p80 = por %p78, %p79
      %p81 = scmp.ne.s32.totalorder %s72, %s73
      %p82 = scmp.eq.s32.totalorder %s20, 0
      %p83 = por %p81, %p82
      %p84 = scmp.ne.s32.totalorder %s72, %s73
      %p85 = scmp.eq.s32.totalorder %s21, 1
      %p86 = por %p84, %p85
      %p88 = scmp.ne.s32.totalorder %s73, %s87
      %p89 = scmp.eq.s32.totalorder %s21, 0
      %p90 = por %p88, %p89
      %s92 = sadd.s32 %s91, 1
      %p95 = scmp.eq.s32.totalorder %s15, 1
      %p96 = scmp.ne.s32.totalorder %s91, %s93
      %p97 = scmp.eq.s32.totalorder %s15, 0
      %p98 = por %p96, %p97
      %p99 = scmp.ne.s32.totalorder %s91, %s93
      %p100 = scmp.eq.s32.totalorder %s20, 1
      %p101 = por %p99, %p100
      %p102 = scmp.ne.s32.totalorder %s93, %s94
      %p103 = scmp.eq.s32.totalorder %s20, 0
      %p104 = por %p102, %p103
      %p105 = scmp.ne.s32.totalorder %s93, %s94
      %p106 = scmp.eq.s32.totalorder %s21, 1
      %p107 = por %p105, %p106
      %p109 = scmp.ne.s32.totalorder %s94, %s108
      %p110 = scmp.eq.s32.totalorder %s21, 0
      %p111 = por %p109, %p110
      %s113 = sadd.s32 %s112, 1
      %p116 = scmp.eq.s32.totalorder %s15, 1
      %p117 = scmp.ne.s32.totalorder %s112, %s114
      %p118 = scmp.eq.s32.totalorder %s15, 0
      %p119 = por %p117, %p118
      %p120 = scmp.ne.s32.totalorder %s112, %s114
      %p121 = scmp.eq.s32.totalorder %s20, 1
      %p122 = por %p120, %p121
      %p123 = scmp.ne.s32.totalorder %s114, %s115
      %p124 = scmp.eq.s32.totalorder %s20, 0
      %p125 = por %p123, %p124
      %p126 = scmp.ne.s32.totalorder %s114, %s115
      %p127 = scmp.eq.s32.totalorder %s21, 1
      %p128 = por %p126, %p127
      %p130 = scmp.ne.s32.totalorder %s115, %s129
      %p131 = scmp.eq.s32.totalorder %s21, 0
      %p132 = por %p130, %p131
      %s133 = ssub.s32 %s15, %s22
      %p134 = scmp.eq.s32.totalorder %s133, 0
      %s136 = sadd.s32 %s135, 1
      %s137 = scalar_select %p134, %s135, %s136
      %p140 = pneg %p134
      %p141 = scmp.eq.s32.totalorder %s15, 1
      %p142 = por %p140, %p141
      %p143 = scmp.ne.s32.totalorder %s135, %s138
      %p144 = scmp.eq.s32.totalorder %s15, 0
      %p145 = por %p143, %p144
      %p146 = scmp.ne.s32.totalorder %s135, %s138
      %p147 = scmp.eq.s32.totalorder %s20, 1
      %p148 = por %p146, %p147
      %p149 = scmp.ne.s32.totalorder %s138, %s139
      %p150 = scmp.eq.s32.totalorder %s20, 0
      %p151 = por %p149, %p150
      %p152 = scmp.ne.s32.totalorder %s138, %s139
      %p153 = scmp.eq.s32.totalorder %s21, 1
      %p154 = por %p152, %p153
      %p156 = scmp.ne.s32.totalorder %s139, %s155
      %p157 = scmp.eq.s32.totalorder %s21, 0
      %p158 = por %p156, %p157
      %p159 = scmp.le.s32.totalorder 1, %s15
      %p160 = scmp.lt.s32.totalorder %s15, 3
      %p161 = pnand %p159, %p160
      %p162 = pneg %p161
      // Predicated region
      $region9: #{tpu_custom_call.1} parent=5 // pred_check
        _
      $region10: #{tpu_custom_call.1} parent=5 // pred_check_branch
        %164 = sbr.rel (%p161) target = $region12
      $region11: #{tpu_custom_call.1} parent=5 // pred_region
        %s165 = ssub.s32 %s15, 1
        // Predicated region
        $region13: #{tpu_custom_call.1} parent=11 // pred_check
          %p166 = pneg %p62
        $region14: #{tpu_custom_call.1} parent=11 // pred_check_branch
          %168 = sbr.rel (%p166) target = $region16
        $region15: #{tpu_custom_call.1} parent=11 // pred_region
          _
        $region16: #{tpu_custom_call.1} parent=11 // pred_fallthru
          _
        // Predicated region
        $region17: #{tpu_custom_call.1} parent=11 // pred_check
          %p169 = pneg %p83
        $region18: #{tpu_custom_call.1} parent=11 // pred_check_branch
          %171 = sbr.rel (%p169) target = $region20
        $region19: #{tpu_custom_call.1} parent=11 // pred_region
          _
        $region20: #{tpu_custom_call.1} parent=11 // pred_fallthru
          _
        // Predicated region
        $region21: #{tpu_custom_call.1} parent=11 // pred_check
          %p172 = pneg %p104
        $region22: #{tpu_custom_call.1} parent=11 // pred_check_branch
          %174 = sbr.rel (%p172) target = $region24
        $region23: #{tpu_custom_call.1} parent=11 // pred_region
          _
        $region24: #{tpu_custom_call.1} parent=11 // pred_fallthru
          _
        // Predicated region
        $region25: #{tpu_custom_call.1} parent=11 // pred_check
          %p175 = pneg %p125
        $region26: #{tpu_custom_call.1} parent=11 // pred_check_branch
          %177 = sbr.rel (%p175) target = $region28
        $region27: #{tpu_custom_call.1} parent=11 // pred_region
          %s179 = ssub.s32 1280, 1280
          %180 = vsyncadd [#allocation3], %s179
          %s181 = sshll.u32 [#allocation2], 4
          %s182 = int_to_ptr.vmem [resolvable:$true] %s181
          %187 = dma.hbm_to_vmem [thread:$0]  %s4, 1280, %s182, [#allocation3], 128, 128, 8
        $region28: #{tpu_custom_call.1} parent=11 // pred_fallthru
          _
      $region12: #{tpu_custom_call.1} parent=5 // pred_fallthru
        _
      %p188 = scmp.lt.s32.totalorder %s15, 2
      // Predicated region
      $region29: #{tpu_custom_call.1} parent=5 // pred_check
        %p189 = pneg %p188
      $region30: #{tpu_custom_call.1} parent=5 // pred_check_branch
        %191 = sbr.rel (%p189) target = $region32
      $region31: #{tpu_custom_call.1} parent=5 // pred_region
        // Predicated region
        $region33: #{tpu_custom_call.1} parent=31 // pred_check
          %p192 = pneg %p35
        $region34: #{tpu_custom_call.1} parent=31 // pred_check_branch
          %194 = sbr.rel (%p192) target = $region36
        $region35: #{tpu_custom_call.1} parent=31 // pred_region
          %s195 = smul.u32 2, %s15
          %p196 = scmp.lt.s32.totalorder %s195, 3
          %s197 = scalar_select %p196, %s195, 3
          %s198 = smul.addr %s197, 8
          %s199 = scalar_lea.vmem %s0, %s198
          %s200 = smul.u32 2, %s15
        $region36: #{tpu_custom_call.1} parent=31 // pred_fallthru
          _
      $region32: #{tpu_custom_call.1} parent=5 // pred_fallthru
        _
      %p201 = scmp.le.s32.totalorder 1, %s15
      %p202 = scmp.lt.s32.totalorder %s15, 3
      %p203 = pnand %p201, %p202
      %p204 = pneg %p203
      // Predicated region
      $region37: #{tpu_custom_call.1} parent=5 // pred_check
        _
      $region38: #{tpu_custom_call.1} parent=5 // pred_check_branch
        %206 = sbr.rel (%p203) target = $region40
      $region39: #{tpu_custom_call.1} parent=5 // pred_region
        %s207 = ssub.s32 %s15, 1
        // Predicated region
        $region41: #{tpu_custom_call.1} parent=39 // pred_check
          %p208 = pneg %p125
        $region42: #{tpu_custom_call.1} parent=39 // pred_check_branch
          %210 = sbr.rel (%p208) target = $region44
        $region43: #{tpu_custom_call.1} parent=39 // pred_region
          %211 = dma.done [#allocation3], 1280
        $region44: #{tpu_custom_call.1} parent=39 // pred_fallthru
          _
        %s212 = smul.u32 2, %s20
        %p213 = scmp.lt.s32.totalorder %s212, 3
        %s214 = scalar_select %p213, %s212, 3
        %s215 = smul.addr %s214, 8
        %s216 = scalar_lea.vmem %s0, %s215
        %p217 = pneg %p41
        %p218 = pneg %p38
        %p219 = pneg %p62
        %p220 = pneg %p59
        %p221 = pneg %p83
        %p222 = pneg %p80
        %p223 = pneg %p104
        %p224 = pneg %p101
        %p225 = pneg %p125
        %p226 = pneg %p122
        %p227 = pneg %p151
        %p228 = pneg %p148
        %s229 = sand.u32 %s138, 1
        %s230 = scalar_lea.sflag [#allocation4], %s229
        %s231 = sand.u32 %s138, 1
        %s232 = smul.addr %s231, 16
        %s233 = scalar_lea.vmem [#allocation5], %s232
        %s234 = smul.u32 2, %s20
        %p235 = scmp.lt.s32.totalorder %s234, 3
        %s236 = scalar_select %p235, %s234, 3
        %s237 = smul.addr %s236, 8
        %s238 = scalar_lea.vmem %s0, %s237
        %s239 = smul.u32 2, %s20
        %s240 = smul.u32 2, %s20
        %v241 = vld [vmem:[%s238] sm:$0xff]
        %v242 = vld [vmem:[%s238 + $0x8] sm:$0xff]
        %v243 = vmul.f32 %v241, %v241
        %v244 = vmul.f32 %v242, %v242
        %vm245 = vcmask 23552
        %v246 = vsel %vm245, %v243, 0.0
        %247 = vadd.xlane.f32.xlu0 %v246
        %v248 = vpop.xlane.xlu0 %247
        %v249 = vsel %vm245, %v244, 0.0
        %250 = vadd.xlane.f32.xlu0 %v249
        %v251 = vpop.xlane.xlu0 %250
        %vm252 = vcmp.eq.f32.partialorder %v248, 0.0
        %vm253 = vcmp.eq.f32.partialorder %v251, 0.0
        %v254 = vsel %vm252, 1.0, %v248
        %v255 = vsel %vm253, 1.0, %v251
        %v256 = vrsqrt.pop %v254
        %v257 = vrsqrt.pop %v255
        %v258 = vmul.f32 %v248, %v256
        %v259 = vmul.f32 %v251, %v257
        %v260 = vmul.f32 %v241, %v256
        %v261 = vmul.f32 %v242, %v257
        %v262 = vsel %vm252, 1, 0
        %v263 = vsel %vm253, 1, 0
        %vm264 = vcmp.eq.s32.totalorder %v262, 1
        %vm265 = vcmp.eq.s32.totalorder %v263, 1
        %v266 = vsel %vm264, 0.0, %v260
        %v267 = vsel %vm265, 0.0, %v261
        %v268 = vlaneseq
        %v269 = vand.u32 %v268, 127
        %v270 = vcvt.s32.f32 %v269
        %v271 = vmul.f32 %v270, 0.2
        %v272 = vsub.f32 %v258, %v271
        %v273 = vsub.f32 %v259, %v271
        %v274 = vmul.f32 %v272, 2.0
        %v275 = vmul.f32 %v273, 2.0
        %v276 = vmul.f32 %v274, -0.5
        %v277 = vmul.f32 %v275, -0.5
        %v278 = vmul.f32 %v276, %v274
        %v279 = vmul.f32 %v277, %v275
        %v280 = vmul.f32 %v278, 1.442695
        %v281 = vpow.pop %v280
        %v282 = vmul.f32 %v279, 1.442695
        %v283 = vpow.pop %v282
        %v284 = vld [vmem:[%s1] sm:$0xff]
        %v285 = vld [vmem:[%s1 + $0x8] sm:$0xff]
        %vm286 = vcmask 130048
        %v288 = vsel %vm286, %v281, 0
        %v291 = vsel %vm286, %v283, 0
        %293 = vmatprep.subr.mxu0 0.0
        %294 = vmatpush1.msra.mxu0 0.0
        %295 = vmatprep.subr.mxu0 0.0
        %296 = vmatpush1.msra.mxu0 0.0
        %297 = vmatprep.subr.mxu0 0.0
        %298 = vmatpush1.msra.mxu0 0.0
        %299 = vmatprep.subr.mxu0 0.0
        %300 = vmatpush1.msra.mxu0 0.0
        %301 = vmatprep.subr.mxu0 0.0
        %302 = vmatpush1.msra.mxu0 0.0
        %303 = vmatprep.subr.mxu0 0.0
        %304 = vmatpush1.msra.mxu0 0.0
        %305 = vmatprep.subr.mxu0 0.0
        %306 = vmatpush1.msra.mxu0 0.0
        %307 = vmatprep.subr.mxu0 0.0
        %308 = vmatpush1.msra.mxu0 0.0
        %309 = vmatprep.subr.mxu0 0.0
        %310 = vmatpush1.msra.mxu0 0.0
        %311 = vmatprep.subr.mxu0 0.0
        %312 = vmatpush1.msra.mxu0 0.0
        %313 = vmatprep.subr.mxu0 0.0
        %314 = vmatpush1.msra.mxu0 0.0
        %315 = vmatprep.subr.mxu0 0.0
        %316 = vmatpush1.msra.mxu0 0.0
        %317 = vmatprep.subr.mxu0 0.0
        %318 = vmatpush1.msra.mxu0 0.0
        %319 = vmatprep.subr.mxu0 0.0
        %320 = vmatpush1.msra.mxu0 0.0
        %321 = vmatprep.subr.mxu0 0.0
        %322 = vmatpush1.msra.mxu0 %v285
        %323 = vmatprep.subr.mxu0 0.0
        %324 = vmatpush1.msra.mxu0 %v284
        %325 = vmatprep.subr.mxu0 0.0
        %326 = vmatpush2.msra.mxu0 0.0
        %327 = vmatprep.subr.mxu0 0.0
        %328 = vmatpush2.msra.mxu0 0.0
        %329 = vmatprep.subr.mxu0 0.0
        %330 = vmatpush2.msra.mxu0 0.0
        %331 = vmatprep.subr.mxu0 0.0
        %332 = vmatpush2.msra.mxu0 0.0
        %333 = vmatprep.subr.mxu0 0.0
        %334 = vmatpush2.msra.mxu0 0.0
        %335 = vmatprep.subr.mxu0 0.0
        %336 = vmatpush2.msra.mxu0 0.0
        %337 = vmatprep.subr.mxu0 0.0
        %338 = vmatpush2.msra.mxu0 0.0
        %339 = vmatprep.subr.mxu0 0.0
        %340 = vmatpush2.msra.mxu0 0.0
        %341 = vmatprep.subr.mxu0 0.0
        %342 = vmatpush2.msra.mxu0 0.0
        %343 = vmatprep.subr.mxu0 0.0
        %344 = vmatpush2.msra.mxu0 0.0
        %345 = vmatprep.subr.mxu0 0.0
        %346 = vmatpush2.msra.mxu0 0.0
        %347 = vmatprep.subr.mxu0 0.0
        %348 = vmatpush2.msra.mxu0 0.0
        %349 = vmatprep.subr.mxu0 0.0
        %350 = vmatpush2.msra.mxu0 0.0
        %351 = vmatprep.subr.mxu0 0.0
        %352 = vmatpush2.msra.mxu0 0.0
        %353 = vmatprep.subr.mxu0 0.0
        %354 = vmatpush2.msra.mxu0 0.0
        %355 = vmatprep.subr.mxu0 0.0
        %356 = vmatpush2.msra.mxu0 0.0
        %357 = vmatprep.mubr.f32.mxu0 0.0
        %358 = vmatmul.mubr.f32.gmra.mxu0 %v288
        %v359 = vpop.f32.mrf.mxu0
        %v360 = vadd.f32 0.0, %v359
        %v361 = vpop.f32.mrf.mxu0
        %362 = vmatprep.mubr.f32.mxu0 0.0
        %363 = vmatmul.mubr.f32.gmra.mxu0 %v291
        %v364 = vpop.f32.mrf.mxu0
        %v365 = vadd.f32 0.0, %v364
        %v366 = vpop.f32.mrf.mxu0
        %367 = vdwg.mxu0
        %v368 = vmul.f32 %v266, 0.48860252
        %v369 = vmul.f32 %v267, 0.48860252
        %372 = vrot.lane.b32.xlu0 %v368, 1
        %v373 = vpop.permute.xlu0 %372
        %374 = vrot.lane.b32.xlu0 %v369, 1
        %v375 = vpop.permute.xlu0 %374
        %vm378 = vcmask 7168
        %v379 = vsel %vm378, 0.2820948, %v373
        %v380 = vsel %vm378, 0.2820948, %v375
        %v381 = vld [vmem:[%s2] sm:$0xf]
        %vm382 = vcmask 31744
        %v384 = vsel %vm382, %v379, 0
        %v387 = vsel %vm382, %v380, 0
        %vm389 = vcmask 1043456
        %v391 = vsel %vm389, %v381, 0
        %393 = vmatprep.subr.mxu0 0.0
        %394 = vmatpush1.msra.mxu0 0.0
        %395 = vmatprep.subr.mxu0 0.0
        %396 = vmatpush1.msra.mxu0 0.0
        %397 = vmatprep.subr.mxu0 0.0
        %398 = vmatpush1.msra.mxu0 0.0
        %399 = vmatprep.subr.mxu0 0.0
        %400 = vmatpush1.msra.mxu0 0.0
        %401 = vmatprep.subr.mxu0 0.0
        %402 = vmatpush1.msra.mxu0 0.0
        %403 = vmatprep.subr.mxu0 0.0
        %404 = vmatpush1.msra.mxu0 0.0
        %405 = vmatprep.subr.mxu0 0.0
        %406 = vmatpush1.msra.mxu0 0.0
        %407 = vmatprep.subr.mxu0 0.0
        %408 = vmatpush1.msra.mxu0 0.0
        %409 = vmatprep.subr.mxu0 0.0
        %410 = vmatpush1.msra.mxu0 0.0
        %411 = vmatprep.subr.mxu0 0.0
        %412 = vmatpush1.msra.mxu0 0.0
        %413 = vmatprep.subr.mxu0 0.0
        %414 = vmatpush1.msra.mxu0 0.0
        %415 = vmatprep.subr.mxu0 0.0
        %416 = vmatpush1.msra.mxu0 0.0
        %417 = vmatprep.subr.mxu0 0.0
        %418 = vmatpush1.msra.mxu0 0.0
        %419 = vmatprep.subr.mxu0 0.0
        %420 = vmatpush1.msra.mxu0 0.0
        %421 = vmatprep.subr.mxu0 0.0
        %422 = vmatpush1.msra.mxu0 0.0
        %423 = vmatprep.subr.mxu0 0.0
        %424 = vmatpush1.msra.mxu0 %v391
        %425 = vmatprep.subr.mxu0 0.0
        %426 = vmatpush2.msra.mxu0 0.0
        %427 = vmatprep.subr.mxu0 0.0
        %428 = vmatpush2.msra.mxu0 0.0
        %429 = vmatprep.subr.mxu0 0.0
        %430 = vmatpush2.msra.mxu0 0.0
        %431 = vmatprep.subr.mxu0 0.0
        %432 = vmatpush2.msra.mxu0 0.0
        %433 = vmatprep.subr.mxu0 0.0
        %434 = vmatpush2.msra.mxu0 0.0
        %435 = vmatprep.subr.mxu0 0.0
        %436 = vmatpush2.msra.mxu0 0.0
        %437 = vmatprep.subr.mxu0 0.0
        %438 = vmatpush2.msra.mxu0 0.0
        %439 = vmatprep.subr.mxu0 0.0
        %440 = vmatpush2.msra.mxu0 0.0
        %441 = vmatprep.subr.mxu0 0.0
        %442 = vmatpush2.msra.mxu0 0.0
        %443 = vmatprep.subr.mxu0 0.0
        %444 = vmatpush2.msra.mxu0 0.0
        %445 = vmatprep.subr.mxu0 0.0
        %446 = vmatpush2.msra.mxu0 0.0
        %447 = vmatprep.subr.mxu0 0.0
        %448 = vmatpush2.msra.mxu0 0.0
        %449 = vmatprep.subr.mxu0 0.0
        %450 = vmatpush2.msra.mxu0 0.0
        %451 = vmatprep.subr.mxu0 0.0
        %452 = vmatpush2.msra.mxu0 0.0
        %453 = vmatprep.subr.mxu0 0.0
        %454 = vmatpush2.msra.mxu0 0.0
        %455 = vmatprep.subr.mxu0 0.0
        %456 = vmatpush2.msra.mxu0 0.0
        %457 = vmatprep.mubr.f32.mxu0 0.0
        %458 = vmatmul.mubr.f32.gmra.mxu0 %v384
        %v459 = vpop.f32.mrf.mxu0
        %v460 = vadd.f32 0.0, %v459
        %v461 = vpop.f32.mrf.mxu0
        %462 = vmatprep.mubr.f32.mxu0 0.0
        %463 = vmatmul.mubr.f32.gmra.mxu0 %v387
        %v464 = vpop.f32.mrf.mxu0
        %v465 = vadd.f32 0.0, %v464
        %v466 = vpop.f32.mrf.mxu0
        %467 = vdwg.mxu0
        %v468 = vmul.f32 %v360, %v460
        %v469 = vmul.f32 %v365, %v465
        %v470 = vld [vmem:[%s3] sm:$0x1]
        %v472 = vlaneseq
        %v473 = vshrl.u32 %v472, 7
        %v474 = vsub.s32 0, %v473
        %v475 = vrot.slane %v470, %v474
        %v477 = vsel %vm264, %v475, 1.0
        %v478 = vsel %vm265, %v475, 1.0
        %v479 = vmul.f32 %v468, %v477
        %v480 = vmul.f32 %v469, %v478
        %v481 = vld [vmem:[#allocation2] sm:$0xff]
        %v482 = vld [vmem:[#allocation2 + $0x8] sm:$0xff]
        %v483 = vld [vmem:[#allocation2 + $0x10] sm:$0xff]
        %v484 = vld [vmem:[#allocation2 + $0x18] sm:$0xff]
        %v485 = vld [vmem:[#allocation2 + $0x20] sm:$0xff]
        %v486 = vld [vmem:[#allocation2 + $0x28] sm:$0xff]
        %v487 = vld [vmem:[#allocation2 + $0x30] sm:$0xff]
        %v488 = vld [vmem:[#allocation2 + $0x38] sm:$0xff]
        %v489 = vld [vmem:[#allocation2 + $0x40] sm:$0xff]
        %v490 = vld [vmem:[#allocation2 + $0x48] sm:$0xff]
        %vm491 = vcmask 654336
        %v493 = vsel %vm491, %v479, 0
        %v496 = vsel %vm491, %v480, 0
        %498 = vmatprep.subr.mxu0 0.0
        %499 = vmatpush1.msra.mxu0 0.0
        %500 = vmatprep.subr.mxu0 0.0
        %501 = vmatpush1.msra.mxu0 0.0
        %502 = vmatprep.subr.mxu0 0.0
        %503 = vmatpush1.msra.mxu0 0.0
        %504 = vmatprep.subr.mxu0 0.0
        %505 = vmatpush1.msra.mxu0 0.0
        %506 = vmatprep.subr.mxu0 0.0
        %507 = vmatpush1.msra.mxu0 0.0
        %508 = vmatprep.subr.mxu0 0.0
        %509 = vmatpush1.msra.mxu0 0.0
        %510 = vmatprep.subr.mxu0 0.0
        %511 = vmatpush1.msra.mxu0 %v490
        %512 = vmatprep.subr.mxu0 0.0
        %513 = vmatpush1.msra.mxu0 %v489
        %514 = vmatprep.subr.mxu0 0.0
        %515 = vmatpush1.msra.mxu0 %v488
        %516 = vmatprep.subr.mxu0 0.0
        %517 = vmatpush1.msra.mxu0 %v487
        %518 = vmatprep.subr.mxu0 0.0
        %519 = vmatpush1.msra.mxu0 %v486
        %520 = vmatprep.subr.mxu0 0.0
        %521 = vmatpush1.msra.mxu0 %v485
        %522 = vmatprep.subr.mxu0 0.0
        %523 = vmatpush1.msra.mxu0 %v484
        %524 = vmatprep.subr.mxu0 0.0
        %525 = vmatpush1.msra.mxu0 %v483
        %526 = vmatprep.subr.mxu0 0.0
        %527 = vmatpush1.msra.mxu0 %v482
        %528 = vmatprep.subr.mxu0 0.0
        %529 = vmatpush1.msra.mxu0 %v481
        %530 = vmatprep.subr.mxu0 0.0
        %531 = vmatpush2.msra.mxu0 0.0
        %532 = vmatprep.subr.mxu0 0.0
        %533 = vmatpush2.msra.mxu0 0.0
        %534 = vmatprep.subr.mxu0 0.0
        %535 = vmatpush2.msra.mxu0 0.0
        %536 = vmatprep.subr.mxu0 0.0
        %537 = vmatpush2.msra.mxu0 0.0
        %538 = vmatprep.subr.mxu0 0.0
        %539 = vmatpush2.msra.mxu0 0.0
        %540 = vmatprep.subr.mxu0 0.0
        %541 = vmatpush2.msra.mxu0 0.0
        %542 = vmatprep.subr.mxu0 0.0
        %543 = vmatpush2.msra.mxu0 0.0
        %544 = vmatprep.subr.mxu0 0.0
        %545 = vmatpush2.msra.mxu0 0.0
        %546 = vmatprep.subr.mxu0 0.0
        %547 = vmatpush2.msra.mxu0 0.0
        %548 = vmatprep.subr.mxu0 0.0
        %549 = vmatpush2.msra.mxu0 0.0
        %550 = vmatprep.subr.mxu0 0.0
        %551 = vmatpush2.msra.mxu0 0.0
        %552 = vmatprep.subr.mxu0 0.0
        %553 = vmatpush2.msra.mxu0 0.0
        %554 = vmatprep.subr.mxu0 0.0
        %555 = vmatpush2.msra.mxu0 0.0
        %556 = vmatprep.subr.mxu0 0.0
        %557 = vmatpush2.msra.mxu0 0.0
        %558 = vmatprep.subr.mxu0 0.0
        %559 = vmatpush2.msra.mxu0 0.0
        %560 = vmatprep.subr.mxu0 0.0
        %561 = vmatpush2.msra.mxu0 0.0
        %562 = vmatprep.mubr.f32.mxu0 0.0
        %563 = vmatmul.mubr.f32.gmra.mxu0 %v493
        %v564 = vpop.f32.mrf.mxu0
        %v565 = vadd.f32 0.0, %v564
        %v566 = vpop.f32.mrf.mxu0
        %567 = vmatprep.mubr.f32.mxu0 0.0
        %568 = vmatmul.mubr.f32.gmra.mxu0 %v496
        %v569 = vpop.f32.mrf.mxu0
        %v570 = vadd.f32 0.0, %v569
        %v571 = vpop.f32.mrf.mxu0
        %572 = vdwg.mxu0
        %573 = vst [vmem:[%s233] sm:$0xff] %v565
        %574 = vst [vmem:[%s233 + $0x8] sm:$0xff] %v570
        %s575 = sand.u32 %s138, 1
        %s576 = scalar_lea.sflag [#allocation4], %s575
        %s577 = sand.u32 %s138, 1
        %s578 = smul.addr %s577, 16
        %s579 = scalar_lea.vmem [#allocation5], %s578
        // Predicated region
        $region45: #{tpu_custom_call.1} parent=39 // pred_check
          %p580 = pneg %p148
        $region46: #{tpu_custom_call.1} parent=39 // pred_check_branch
          %582 = sbr.rel (%p580) target = $region48
        $region47: #{tpu_custom_call.1} parent=39 // pred_region
          %s583 = smul.u32 2, %s20
          %s585 = ssub.s32 256, 256
          %586 = vsyncadd %s576, %s585
          %s587 = smul.addr %s583, 128
          %s588 = scalar_lea.hbm %s5, %s587
          %s589 = sshll.u32 %s579, 4
          %s590 = int_to_ptr.vmem [resolvable:$true] %s589
          %595 = dma.vmem_to_hbm [thread:$0]  %s590, 256, %s588, %s576, 128, 128, 8
        $region48: #{tpu_custom_call.1} parent=39 // pred_fallthru
          _
      $region40: #{tpu_custom_call.1} parent=5 // pred_fallthru
        _
      %p596 = scmp.le.s32.totalorder 2, %s15
      // Predicated region
      $region49: #{tpu_custom_call.1} parent=5 // pred_check
        %p597 = pneg %p596
      $region50: #{tpu_custom_call.1} parent=5 // pred_check_branch
        %599 = sbr.rel (%p597) target = $region52
      $region51: #{tpu_custom_call.1} parent=5 // pred_region
        %s600 = ssub.s32 %s15, 2
        // Predicated region
        $region53: #{tpu_custom_call.1} parent=51 // pred_check
          %p601 = pneg %p154
        $region54: #{tpu_custom_call.1} parent=51 // pred_check_branch
          %603 = sbr.rel (%p601) target = $region56
        $region55: #{tpu_custom_call.1} parent=51 // pred_region
          %s604 = sand.u32 %s139, 1
          %s605 = scalar_lea.sflag [#allocation4], %s604
          %s606 = sand.u32 %s139, 1
          %s607 = smul.addr %s606, 16
          %s608 = scalar_lea.vmem [#allocation5], %s607
          %609 = dma.done %s605, 256
        $region56: #{tpu_custom_call.1} parent=51 // pred_fallthru
          _
      $region52: #{tpu_custom_call.1} parent=5 // pred_fallthru
        _
    $region6: #{tpu_custom_call.1} parent=1 // loop_footer
      %s19 = sadd.s32 1, %s15
    $region7: #{tpu_custom_call.1} parent=1 // loop_footer_branch
      %14 = sbr.rel target = $region3
    $region8: #{tpu_custom_call.1} parent=1 // loop_exit
      _
    %610 = vsyncpa [#allocation3], 1
    %s611 = scalar_lea.sflag [#allocation3], 1
    %612 = vsyncpa %s611, 1
    %613 = vsyncpa [#allocation4], 1
    %s614 = scalar_lea.sflag [#allocation4], 1
    %615 = vsyncpa %s614, 1

</llo_original>
